<compile_context>
chip_gen: v7x
topology: tpu7x:2x2x1
jax: 0.10.0
libtpu: 0.0.40
codegen_flags: <defaults>
</compile_context>

<pallas_src>
import functools

import jax
import jax.numpy as jnp
import numpy as np
from jax.experimental import pallas as pl
from jax.experimental.pallas import tpu as pltpu

# Taylor seed is evaluated on q / 4^K; K=5 keeps the seed accurate for |q| <~ 0.5*4^5 ≈ 500
# (cosh overflows f32 long after the model's realistic range), with ~f32 accuracy after
# the K exact doubling recurrences.  Fewer doublings = shorter serial VPU chain.
_EXPM_DOUBLINGS = 5


def _cs_of_q(q, doublings=_EXPM_DOUBLINGS):
    """c(q)-1 and s(q) for the entire functions c(q)=cosh(sqrt(q)) (=cos for q<0) and
    s(q)=sinh(sqrt(q))/sqrt(q) (=sin(.)/. for q<0), branch-free, VPU-only.
    Returning c-1 keeps full relative precision for tiny q through the doublings."""
    x = q * (1.0 / float(4 ** doublings))
    # c(x)-1 = x/2! + x^2/4! + x^3/6! + x^4/8!
    u = x * (1.0 / 2.0 + x * (1.0 / 24.0 + x * (1.0 / 720.0 + x * (1.0 / 40320.0))))
    # s(x)   = 1 + x/3! + x^2/5! + x^3/7! + x^4/9!
    s = 1.0 + x * (1.0 / 6.0 + x * (1.0 / 120.0 + x * (1.0 / 5040.0 + x * (1.0 / 362880.0))))
    for _ in range(doublings):
        s = s * (1.0 + u)            # s(4x) = s(x) * c(x)
        u = u * (4.0 + 2.0 * u)      # c(4x) - 1 = 4(c-1) + 2(c-1)^2
    return u, s


def _neural_lto_kernel(xy_ref, w1_ref, w2_ref, e0_ref, out_ref, *, d_in, n_loop, n_frame):
    f32 = jnp.float32
    xyc = xy_ref[...].astype(f32)              # (TP, 2*d_in+1) = [xy0 | 1 | xy]
    xy0a = xyc[:, :d_in + 1]                   # [xy0 | 1]  (bias folded into w1)
    t = xyc[:, d_in + 1:] - xyc[:, :d_in]      # diff = xy - xy0, (TP, n)

    # field_net over the whole point tile: two MXU matmuls, biases folded into weights,
    # second-layer columns permuted to element-major order in the wrapper.
    h = jnp.maximum(jnp.dot(xy0a, w1_ref[...], preferred_element_type=f32), 0.0)
    l = jnp.dot(h, w2_ref[...], preferred_element_type=f32)
    # l: (TP, 4n) = [a_0..a_{n-1} | b_0.. | c_0.. | d_0..]   (L_i = [[a,b],[c,d]])

    n = n_loop
    a = l[:, 0 * n:1 * n]
    b = l[:, 1 * n:2 * n]
    c = l[:, 2 * n:3 * n]
    d = l[:, 3 * n:4 * n]

    # --- lane-parallel closed-form expm of A_i = t_i * L_i (all points & manifolds) ---
    mu = 0.5 * t * (a + d)             # tr(A_i)/2
    p = 0.5 * t * (a - d)              # traceless part B_i = [[p, ab], [ac, -p]]
    ab = t * b
    ac = t * c
    q = p * p + ab * ac                # B_i^2 = q_i * I
    u, s = _cs_of_q(q)
    cc = 1.0 + u
    emu = jnp.exp(mu)                  # EUP
    e00 = emu * (cc + s * p)
    e01 = emu * (s * ab)
    e10 = emu * (s * ac)
    e11 = emu * (cc - s * p)

    # --- compose M = E_{n-1} @ ... @ E_0 per point (VPU, (TP,1) lane slices) ---
    m00 = e00[:, 0:1]
    m01 = e01[:, 0:1]
    m10 = e10[:, 0:1]
    m11 = e11[:, 0:1]
    for i in range(1, n):
        x00 = e00[:, i:i + 1]
        x01 = e01[:, i:i + 1]
        x10 = e10[:, i:i + 1]
        x11 = e11[:, i:i + 1]
        m00, m01, m10, m11 = (x00 * m00 + x01 * m10,
                              x00 * m01 + x01 * m11,
                              x10 * m00 + x11 * m10,
                              x10 * m01 + x11 * m11)

    # --- apply: out = e0 @ M.T, e0/out in dim-major layout: [col0 (B) | col1 (B)] ---
    e0v = e0_ref[...].astype(f32)              # (TP, 2*B)
    Bf = n_frame
    e0c0 = e0v[:, :Bf]
    e0c1 = e0v[:, Bf:]
    out_ref[:, :Bf] = (m00 * e0c0 + m01 * e0c1).astype(out_ref.dtype)
    out_ref[:, Bf:] = (m10 * e0c0 + m11 * e0c1).astype(out_ref.dtype)


def neural_lto_forward(xy, xy0, e0, params, *, dim, n_mani, point_tile=128):
    """Batched NeuralLTO forward.  xy, xy0: (P, meta_input_dim); e0: (P, B, dim) (or
    (B, dim) broadcast to all points).  Returns (P, B, dim)."""
    if dim != 2:
        # TODO(synk): generic-dim matrix_exp (Pade/Taylor) not implemented; moons model uses dim=2.
        raise NotImplementedError("Pallas NeuralLTO kernel is specialised to dim == 2.")
    w1, b1, w2, b2 = params
    xy = jnp.asarray(xy, jnp.float32)
    xy0 = jnp.asarray(xy0, jnp.float32)
    e0 = jnp.asarray(e0, jnp.float32)
    P, d_in = xy.shape
    n_loop = d_in                       # torch loops over range(diff.shape[1])
    assert n_loop <= n_mani, "forward indexes L_all[i] for i in range(diff.shape[1])"
    if e0.ndim == 2:
        e0 = jnp.broadcast_to(e0[None], (P,) + e0.shape)
    B = e0.shape[1]
    H = w1.shape[1]

    # Reorder (and drop unused) field_net output columns to element-major layout:
    # new column e*n_loop + i  <-  old column i*(dim*dim) + e.
    perm = np.array([i * (dim * dim) + e
                     for e in range(dim * dim)
                     for i in range(n_loop)], dtype=np.int32)
    w2p = jnp.asarray(w2, jnp.float32)[:, perm]
    b2p = jnp.asarray(b2, jnp.float32).reshape(1, -1)[:, perm]

    # Fold biases: w1 gains a bias row plus a synthetic "ones" ReLU unit (weights 0,
    # bias 1 -> ReLU output 1) so b2 can be folded as an extra row of w2.
    w1_full = jnp.zeros((d_in + 1, H + 1), jnp.float32)
    w1_full = w1_full.at[:d_in, :H].set(jnp.asarray(w1, jnp.float32))
    w1_full = w1_full.at[d_in, :H].set(jnp.asarray(b1, jnp.float32).reshape(-1))
    w1_full = w1_full.at[d_in, H].set(1.0)
    w2_full = jnp.concatenate([w2p, b2p], axis=0)          # (H+1, 4*n_loop)

    # Pack per-point inputs: [xy0 | 1 | xy] (one DMA per point tile), e0 dim-major.
    ones = jnp.ones((P, 1), jnp.float32)
    xy_cat = jnp.concatenate([xy0, ones, xy], axis=1)       # (P, 2*d_in + 1)
    e0_flat = jnp.transpose(e0, (0, 2, 1)).reshape(P, dim * B)

    # Pad point count to a tile multiple (>= 8 for the sublane constraint).
    tp = int(point_tile)
    assert tp % 8 == 0, "point_tile must be a multiple of 8"
    P_pad = ((P + 7) // 8) * 8
    if P_pad > tp:
        P_pad = ((P + tp - 1) // tp) * tp
        TP = tp
    else:
        TP = P_pad
    if P_pad != P:
        pad = ((0, P_pad - P), (0, 0))
        xy_cat = jnp.pad(xy_cat, pad)
        e0_flat = jnp.pad(e0_flat, pad)
    n_steps = P_pad // TP

    kernel = functools.partial(_neural_lto_kernel, d_in=d_in, n_loop=n_loop, n_frame=B)

    cost = pl.CostEstimate(
        flops=int(2 * P_pad * ((d_in + 1) * (H + 1) + (H + 1) * 4 * n_loop)
                  + P_pad * n_loop * (20 + 8 * _EXPM_DOUBLINGS)
                  + P_pad * (8 * n_loop + 8 * B)),
        transcendentals=int(P_pad * n_loop),
        bytes_accessed=int(4 * (xy_cat.size + e0_flat.size + w1_full.size + w2_full.size
                                + P_pad * dim * B)),
    )

    out_flat = pl.pallas_call(
        kernel,
        out_shape=jax.ShapeDtypeStruct((P_pad, dim * B), jnp.float32),
        grid=(n_steps,),
        in_specs=[
            pl.BlockSpec((TP, 2 * d_in + 1), lambda i: (i, 0)),     # per-point data
            pl.BlockSpec((d_in + 1, H + 1), lambda i: (0, 0)),      # weights: VMEM-resident
            pl.BlockSpec((H + 1, 4 * n_loop), lambda i: (0, 0)),    # weights: VMEM-resident
            pl.BlockSpec((TP, dim * B), lambda i: (i, 0)),          # per-point frames
        ],
        out_specs=pl.BlockSpec((TP, dim * B), lambda i: (i, 0)),
        compiler_params=pltpu.CompilerParams(dimension_semantics=("parallel",)),
        cost_estimate=cost,
    )(xy_cat, w1_full, w2_full, e0_flat)

    out = jnp.transpose(out_flat[:P].reshape(P, dim, B), (0, 2, 1))  # back to (P, B, dim)
    return out


# ----------------------- NumPy float64 reference (torch-faithful) -----------------------

def _np_expm(A, order=30):
    """Scaling-and-squaring Taylor expm in float64 (independent of the kernel's formula)."""
    A = np.asarray(A, dtype=np.float64)
    nrm = float(np.max(np.sum(np.abs(A), axis=1)))
    s = 0
    if nrm > 0.5:
        s = int(np.ceil(np.log2(nrm / 0.5)))
    As = A / (2.0 ** s)
    E = np.eye(A.shape[0])
    term = np.eye(A.shape[0])
    for k in range(1, order):
        term = term @ As / k
        E = E + term
    for _ in range(s):
        E = E @ E
    return E


def _reference_forward(xy, xy0, e0, w1, b1, w2, b2, dim, n_mani):
    xy = np.asarray(xy, np.float64)
    xy0 = np.asarray(xy0, np.float64)
    e0 = np.asarray(e0, np.float64)
    w1 = np.asarray(w1, np.float64)
    b1 = np.asarray(b1, np.float64).reshape(-1)
    w2 = np.asarray(w2, np.float64)
    b2 = np.asarray(b2, np.float64).reshape(-1)
    P = xy.shape[0]
    outs = np.zeros_like(e0)
    for p in range(P):
        h = np.maximum(xy0[p] @ w1 + b1, 0.0)
        L_all = (h @ w2 + b2).reshape(n_mani, dim, dim)
        diff = xy[p] - xy0[p]
        e = e0[p]
        for i in range(diff.shape[0]):
            e = e @ _np_expm(diff[i] * L_all[i]).T
        outs[p] = e
    return outs


if __name__ == "__main__":
    # Small shapes consistent with the module: 2-D moons data, many points per call.
    dim = 2                # self.dim
    meta_input_dim = 2     # input to field_net (== xy0's feature dim)
    n_mani = 2             # number of manifold directions
    hidden = 32            # hidden width of field_net
    B = 8                  # number of frame vectors per e0
    P = 96                 # points batched into one pallas_call (grid of 3 x 32-point tiles)

    key = jax.random.PRNGKey(0)
    ks = jax.random.split(key, 7)

    xy = jax.random.normal(ks[0], (P, meta_input_dim), jnp.float32)
    xy0 = jax.random.normal(ks[1], (P, meta_input_dim), jnp.float32)
    e0 = jax.random.normal(ks[2], (P, B, dim), jnp.float32)

    # Deterministic parameter init (uniform, ~PyTorch Linear scale).
    s1 = 1.0 / np.sqrt(meta_input_dim)
    w1 = jax.random.uniform(ks[3], (meta_input_dim, hidden), jnp.float32, -s1, s1)
    b1 = jax.random.uniform(ks[4], (1, hidden), jnp.float32, -s1, s1)
    s2 = 1.0 / np.sqrt(hidden)
    w2 = jax.random.uniform(ks[5], (hidden, n_mani * dim * dim), jnp.float32, -s2, s2)
    b2 = jax.random.uniform(ks[6], (1, n_mani * dim * dim), jnp.float32, -s2, s2)

    params = (w1, b1, w2, b2)

    # Base check: kernel vs torch-faithful float64 reference.
    out = neural_lto_forward(xy, xy0, e0, params, dim=dim, n_mani=n_mani, point_tile=32)
    out = jax.block_until_ready(out)
    ref = _reference_forward(xy, xy0, e0, w1, b1, w2, b2, dim, n_mani)
    np.testing.assert_allclose(np.asarray(out), ref, rtol=2e-3, atol=1e-4)

    # Stress check: larger |diff| drives the closed-form expm into larger |q|
    # (both hyperbolic and oscillatory regimes); compare with a scale-normalized bound.
    xy_big = 4.0 * xy
    out_big = neural_lto_forward(xy_big, xy0, e0, params, dim=dim, n_mani=n_mani, point_tile=32)
    out_big = jax.block_until_ready(out_big)
    ref_big = _reference_forward(xy_big, xy0, e0, w1, b1, w2, b2, dim, n_mani)
    scale = max(1.0, float(np.max(np.abs(ref_big))))
    max_err = float(np.max(np.abs(np.asarray(out_big) - ref_big)))
    assert max_err / scale < 2e-3, f"large-|q| expm check failed: {max_err / scale}"

    print("KERNEL_OK")
</pallas_src>

<mosaic_0001>
module attributes {stable_mosaic.version = 11 : i64} {
  func.func @_neural_lto_kernel(%arg0: i32, %arg1: memref<32x5xf32, #tpu.memory_space<vmem>>, %arg2: memref<3x33xf32, #tpu.memory_space<vmem>>, %arg3: memref<33x8xf32, #tpu.memory_space<vmem>>, %arg4: memref<32x16xf32, #tpu.memory_space<vmem>>, %arg5: memref<32x16xf32, #tpu.memory_space<vmem>>) attributes {dimension_semantics = [#tpu.dimension_semantics<parallel>], iteration_bounds = array<i64: 3>, scalar_prefetch = 0 : i64, scratch_operands = 0 : i64, tpu.core_type = #tpu.core_type<tc>, window_params = [{transform_indices = @transform_0, window_bounds = array<i64: 32, 5>}, {pipeline_mode = #tpu.pipeline_mode<synchronous>, transform_indices = @transform_1, window_bounds = array<i64: 3, 33>}, {pipeline_mode = #tpu.pipeline_mode<synchronous>, transform_indices = @transform_2, window_bounds = array<i64: 33, 8>}, {transform_indices = @transform_3, window_bounds = array<i64: 32, 16>}, {transform_indices = @transform_4, window_bounds = array<i64: 32, 16>}]} {
    %c0 = arith.constant 0 : index
    %c0_0 = arith.constant 0 : index
    %0 = vector.load %arg1[%c0, %c0_0] : memref<32x5xf32, #tpu.memory_space<vmem>>, vector<32x5xf32>
    %1 = vector.extract_strided_slice %0 {offsets = [0, 0], sizes = [32, 3], strides = [1, 1]} : vector<32x5xf32> to vector<32x3xf32>
    %2 = vector.extract_strided_slice %0 {offsets = [0, 3], sizes = [32, 2], strides = [1, 1]} : vector<32x5xf32> to vector<32x2xf32>
    %3 = vector.extract_strided_slice %0 {offsets = [0, 0], sizes = [32, 2], strides = [1, 1]} : vector<32x5xf32> to vector<32x2xf32>
    %4 = arith.subf %2, %3 : vector<32x2xf32>
    %c0_1 = arith.constant 0 : index
    %c0_2 = arith.constant 0 : index
    %5 = vector.load %arg2[%c0_1, %c0_2] : memref<3x33xf32, #tpu.memory_space<vmem>>, vector<3x33xf32>
    %cst = arith.constant dense<0.000000e+00> : vector<32x33xf32>
    %6 = tpu.matmul %1, %5, %cst {dimension_numbers = #tpu.dot_dimension_numbers<[1], [0], [0], [1], [0, 0, 1, 1], [], []>} : vector<32x3xf32>, vector<3x33xf32>, vector<32x33xf32> -> vector<32x33xf32>
    %cst_3 = arith.constant 0.000000e+00 : f32
    %7 = vector.broadcast %cst_3 : f32 to vector<32x33xf32>
    %8 = arith.maximumf %6, %7 : vector<32x33xf32>
    %c0_4 = arith.constant 0 : index
    %c0_5 = arith.constant 0 : index
    %9 = vector.load %arg3[%c0_4, %c0_5] : memref<33x8xf32, #tpu.memory_space<vmem>>, vector<33x8xf32>
    %cst_6 = arith.constant dense<0.000000e+00> : vector<32x8xf32>
    %10 = tpu.matmul %8, %9, %cst_6 {dimension_numbers = #tpu.dot_dimension_numbers<[1], [0], [0], [1], [0, 0, 1, 1], [], []>} : vector<32x33xf32>, vector<33x8xf32>, vector<32x8xf32> -> vector<32x8xf32>
    %11 = vector.extract_strided_slice %10 {offsets = [0, 0], sizes = [32, 2], strides = [1, 1]} : vector<32x8xf32> to vector<32x2xf32>
    %12 = vector.extract_strided_slice %10 {offsets = [0, 2], sizes = [32, 2], strides = [1, 1]} : vector<32x8xf32> to vector<32x2xf32>
    %13 = vector.extract_strided_slice %10 {offsets = [0, 4], sizes = [32, 2], strides = [1, 1]} : vector<32x8xf32> to vector<32x2xf32>
    %14 = vector.extract_strided_slice %10 {offsets = [0, 6], sizes = [32, 2], strides = [1, 1]} : vector<32x8xf32> to vector<32x2xf32>
    %cst_7 = arith.constant 5.000000e-01 : f32
    %15 = vector.broadcast %cst_7 : f32 to vector<32x2xf32>
    %16 = arith.mulf %15, %4 : vector<32x2xf32>
    %17 = arith.addf %11, %14 : vector<32x2xf32>
    %18 = arith.mulf %16, %17 : vector<32x2xf32>
    %cst_8 = arith.constant 5.000000e-01 : f32
    %19 = vector.broadcast %cst_8 : f32 to vector<32x2xf32>
    %20 = arith.mulf %19, %4 : vector<32x2xf32>
    %21 = arith.subf %11, %14 : vector<32x2xf32>
    %22 = arith.mulf %20, %21 : vector<32x2xf32>
    %23 = arith.mulf %4, %12 : vector<32x2xf32>
    %24 = arith.mulf %4, %13 : vector<32x2xf32>
    %25 = arith.mulf %22, %22 : vector<32x2xf32>
    %26 = arith.mulf %23, %24 : vector<32x2xf32>
    %27 = arith.addf %25, %26 : vector<32x2xf32>
    %cst_9 = arith.constant 9.765625E-4 : f32
    %28 = vector.broadcast %cst_9 : f32 to vector<32x2xf32>
    %29 = arith.mulf %27, %28 : vector<32x2xf32>
    %cst_10 = arith.constant 2.48015876E-5 : f32
    %30 = vector.broadcast %cst_10 : f32 to vector<32x2xf32>
    %31 = arith.mulf %29, %30 : vector<32x2xf32>
    %cst_11 = arith.constant 0.00138888892 : f32
    %32 = vector.broadcast %cst_11 : f32 to vector<32x2xf32>
    %33 = arith.addf %32, %31 : vector<32x2xf32>
    %34 = arith.mulf %29, %33 : vector<32x2xf32>
    %cst_12 = arith.constant 0.0416666679 : f32
    %35 = vector.broadcast %cst_12 : f32 to vector<32x2xf32>
    %36 = arith.addf %35, %34 : vector<32x2xf32>
    %37 = arith.mulf %29, %36 : vector<32x2xf32>
    %cst_13 = arith.constant 5.000000e-01 : f32
    %38 = vector.broadcast %cst_13 : f32 to vector<32x2xf32>
    %39 = arith.addf %38, %37 : vector<32x2xf32>
    %40 = arith.mulf %29, %39 : vector<32x2xf32>
    %cst_14 = arith.constant 2.75573188E-6 : f32
    %41 = vector.broadcast %cst_14 : f32 to vector<32x2xf32>
    %42 = arith.mulf %29, %41 : vector<32x2xf32>
    %cst_15 = arith.constant 1.98412701E-4 : f32
    %43 = vector.broadcast %cst_15 : f32 to vector<32x2xf32>
    %44 = arith.addf %43, %42 : vector<32x2xf32>
    %45 = arith.mulf %29, %44 : vector<32x2xf32>
    %cst_16 = arith.constant 0.00833333377 : f32
    %46 = vector.broadcast %cst_16 : f32 to vector<32x2xf32>
    %47 = arith.addf %46, %45 : vector<32x2xf32>
    %48 = arith.mulf %29, %47 : vector<32x2xf32>
    %cst_17 = arith.constant 0.166666672 : f32
    %49 = vector.broadcast %cst_17 : f32 to vector<32x2xf32>
    %50 = arith.addf %49, %48 : vector<32x2xf32>
    %51 = arith.mulf %29, %50 : vector<32x2xf32>
    %cst_18 = arith.constant 1.000000e+00 : f32
    %52 = vector.broadcast %cst_18 : f32 to vector<32x2xf32>
    %53 = arith.addf %52, %51 : vector<32x2xf32>
    %cst_19 = arith.constant 1.000000e+00 : f32
    %54 = vector.broadcast %cst_19 : f32 to vector<32x2xf32>
    %55 = arith.addf %54, %40 : vector<32x2xf32>
    %56 = arith.mulf %53, %55 : vector<32x2xf32>
    %cst_20 = arith.constant 2.000000e+00 : f32
    %57 = vector.broadcast %cst_20 : f32 to vector<32x2xf32>
    %58 = arith.mulf %57, %40 : vector<32x2xf32>
    %cst_21 = arith.constant 4.000000e+00 : f32
    %59 = vector.broadcast %cst_21 : f32 to vector<32x2xf32>
    %60 = arith.addf %59, %58 : vector<32x2xf32>
    %61 = arith.mulf %40, %60 : vector<32x2xf32>
    %cst_22 = arith.constant 1.000000e+00 : f32
    %62 = vector.broadcast %cst_22 : f32 to vector<32x2xf32>
    %63 = arith.addf %62, %61 : vector<32x2xf32>
    %64 = arith.mulf %56, %63 : vector<32x2xf32>
    %cst_23 = arith.constant 2.000000e+00 : f32
    %65 = vector.broadcast %cst_23 : f32 to vector<32x2xf32>
    %66 = arith.mulf %65, %61 : vector<32x2xf32>
    %cst_24 = arith.constant 4.000000e+00 : f32
    %67 = vector.broadcast %cst_24 : f32 to vector<32x2xf32>
    %68 = arith.addf %67, %66 : vector<32x2xf32>
    %69 = arith.mulf %61, %68 : vector<32x2xf32>
    %cst_25 = arith.constant 1.000000e+00 : f32
    %70 = vector.broadcast %cst_25 : f32 to vector<32x2xf32>
    %71 = arith.addf %70, %69 : vector<32x2xf32>
    %72 = arith.mulf %64, %71 : vector<32x2xf32>
    %cst_26 = arith.constant 2.000000e+00 : f32
    %73 = vector.broadcast %cst_26 : f32 to vector<32x2xf32>
    %74 = arith.mulf %73, %69 : vector<32x2xf32>
    %cst_27 = arith.constant 4.000000e+00 : f32
    %75 = vector.broadcast %cst_27 : f32 to vector<32x2xf32>
    %76 = arith.addf %75, %74 : vector<32x2xf32>
    %77 = arith.mulf %69, %76 : vector<32x2xf32>
    %cst_28 = arith.constant 1.000000e+00 : f32
    %78 = vector.broadcast %cst_28 : f32 to vector<32x2xf32>
    %79 = arith.addf %78, %77 : vector<32x2xf32>
    %80 = arith.mulf %72, %79 : vector<32x2xf32>
    %cst_29 = arith.constant 2.000000e+00 : f32
    %81 = vector.broadcast %cst_29 : f32 to vector<32x2xf32>
    %82 = arith.mulf %81, %77 : vector<32x2xf32>
    %cst_30 = arith.constant 4.000000e+00 : f32
    %83 = vector.broadcast %cst_30 : f32 to vector<32x2xf32>
    %84 = arith.addf %83, %82 : vector<32x2xf32>
    %85 = arith.mulf %77, %84 : vector<32x2xf32>
    %cst_31 = arith.constant 1.000000e+00 : f32
    %86 = vector.broadcast %cst_31 : f32 to vector<32x2xf32>
    %87 = arith.addf %86, %85 : vector<32x2xf32>
    %88 = arith.mulf %80, %87 : vector<32x2xf32>
    %cst_32 = arith.constant 2.000000e+00 : f32
    %89 = vector.broadcast %cst_32 : f32 to vector<32x2xf32>
    %90 = arith.mulf %89, %85 : vector<32x2xf32>
    %cst_33 = arith.constant 4.000000e+00 : f32
    %91 = vector.broadcast %cst_33 : f32 to vector<32x2xf32>
    %92 = arith.addf %91, %90 : vector<32x2xf32>
    %93 = arith.mulf %85, %92 : vector<32x2xf32>
    %cst_34 = arith.constant 1.000000e+00 : f32
    %94 = vector.broadcast %cst_34 : f32 to vector<32x2xf32>
    %95 = arith.addf %94, %93 : vector<32x2xf32>
    %96 = math.exp %18 : vector<32x2xf32>
    %97 = arith.mulf %88, %22 : vector<32x2xf32>
    %98 = arith.addf %95, %97 : vector<32x2xf32>
    %99 = arith.mulf %96, %98 : vector<32x2xf32>
    %100 = arith.mulf %88, %23 : vector<32x2xf32>
    %101 = arith.mulf %96, %100 : vector<32x2xf32>
    %102 = arith.mulf %88, %24 : vector<32x2xf32>
    %103 = arith.mulf %96, %102 : vector<32x2xf32>
    %104 = arith.mulf %88, %22 : vector<32x2xf32>
    %105 = arith.subf %95, %104 : vector<32x2xf32>
    %106 = arith.mulf %96, %105 : vector<32x2xf32>
    %107 = vector.extract_strided_slice %99 {offsets = [0, 0], sizes = [32, 1], strides = [1, 1]} : vector<32x2xf32> to vector<32x1xf32>
    %108 = vector.extract_strided_slice %101 {offsets = [0, 0], sizes = [32, 1], strides = [1, 1]} : vector<32x2xf32> to vector<32x1xf32>
    %109 = vector.extract_strided_slice %103 {offsets = [0, 0], sizes = [32, 1], strides = [1, 1]} : vector<32x2xf32> to vector<32x1xf32>
    %110 = vector.extract_strided_slice %106 {offsets = [0, 0], sizes = [32, 1], strides = [1, 1]} : vector<32x2xf32> to vector<32x1xf32>
    %111 = vector.extract_strided_slice %99 {offsets = [0, 1], sizes = [32, 1], strides = [1, 1]} : vector<32x2xf32> to vector<32x1xf32>
    %112 = vector.extract_strided_slice %101 {offsets = [0, 1], sizes = [32, 1], strides = [1, 1]} : vector<32x2xf32> to vector<32x1xf32>
    %113 = vector.extract_strided_slice %103 {offsets = [0, 1], sizes = [32, 1], strides = [1, 1]} : vector<32x2xf32> to vector<32x1xf32>
    %114 = vector.extract_strided_slice %106 {offsets = [0, 1], sizes = [32, 1], strides = [1, 1]} : vector<32x2xf32> to vector<32x1xf32>
    %115 = arith.mulf %111, %107 : vector<32x1xf32>
    %116 = arith.mulf %112, %109 : vector<32x1xf32>
    %117 = arith.addf %115, %116 : vector<32x1xf32>
    %118 = arith.mulf %111, %108 : vector<32x1xf32>
    %119 = arith.mulf %112, %110 : vector<32x1xf32>
    %120 = arith.addf %118, %119 : vector<32x1xf32>
    %121 = arith.mulf %113, %107 : vector<32x1xf32>
    %122 = arith.mulf %114, %109 : vector<32x1xf32>
    %123 = arith.addf %121, %122 : vector<32x1xf32>
    %124 = arith.mulf %113, %108 : vector<32x1xf32>
    %125 = arith.mulf %114, %110 : vector<32x1xf32>
    %126 = arith.addf %124, %125 : vector<32x1xf32>
    %c0_35 = arith.constant 0 : index
    %c0_36 = arith.constant 0 : index
    %127 = vector.load %arg4[%c0_35, %c0_36] : memref<32x16xf32, #tpu.memory_space<vmem>>, vector<32x16xf32>
    %128 = vector.extract_strided_slice %127 {offsets = [0, 0], sizes = [32, 8], strides = [1, 1]} : vector<32x16xf32> to vector<32x8xf32>
    %129 = vector.extract_strided_slice %127 {offsets = [0, 8], sizes = [32, 8], strides = [1, 1]} : vector<32x16xf32> to vector<32x8xf32>
    %130 = vector.broadcast %117 : vector<32x1xf32> to vector<32x8xf32>
    %131 = arith.mulf %130, %128 : vector<32x8xf32>
    %132 = vector.broadcast %120 : vector<32x1xf32> to vector<32x8xf32>
    %133 = arith.mulf %132, %129 : vector<32x8xf32>
    %134 = arith.addf %131, %133 : vector<32x8xf32>
    %c0_37 = arith.constant 0 : index
    %c0_38 = arith.constant 0 : index
    %135 = vector.load %arg5[%c0_37, %c0_38] : memref<32x16xf32, #tpu.memory_space<vmem>>, vector<32x8xf32>
    tpu.vector_store %arg5[%c0_37, %c0_38], %134 {strides = array<i32>} : memref<32x16xf32, #tpu.memory_space<vmem>>, vector<32x8xf32>,
    %136 = vector.broadcast %123 : vector<32x1xf32> to vector<32x8xf32>
    %137 = arith.mulf %136, %128 : vector<32x8xf32>
    %138 = vector.broadcast %126 : vector<32x1xf32> to vector<32x8xf32>
    %139 = arith.mulf %138, %129 : vector<32x8xf32>
    %140 = arith.addf %137, %139 : vector<32x8xf32>
    %c0_39 = arith.constant 0 : index
    %c8 = arith.constant 8 : index
    %141 = vector.load %arg5[%c0_39, %c8] : memref<32x16xf32, #tpu.memory_space<vmem>>, vector<32x8xf32>
    tpu.vector_store %arg5[%c0_39, %c8], %140 {strides = array<i32>} : memref<32x16xf32, #tpu.memory_space<vmem>>, vector<32x8xf32>,
    return
  }
  func.func @transform_0(%arg0: i32) -> (i32, i32) {
    %c0_i32 = arith.constant 0 : i32
    %c0_i32_0 = arith.constant 0 : i32
    return %arg0, %c0_i32 : i32, i32
  }
  func.func @transform_1(%arg0: i32) -> (i32, i32) {
    %c0_i32 = arith.constant 0 : i32
    %c0_i32_0 = arith.constant 0 : i32
    %c0_i32_1 = arith.constant 0 : i32
    return %c0_i32, %c0_i32_0 : i32, i32
  }
  func.func @transform_2(%arg0: i32) -> (i32, i32) {
    %c0_i32 = arith.constant 0 : i32
    %c0_i32_0 = arith.constant 0 : i32
    %c0_i32_1 = arith.constant 0 : i32
    return %c0_i32, %c0_i32_0 : i32, i32
  }
  func.func @transform_3(%arg0: i32) -> (i32, i32) {
    %c0_i32 = arith.constant 0 : i32
    %c0_i32_0 = arith.constant 0 : i32
    return %arg0, %c0_i32 : i32, i32
  }
  func.func @transform_4(%arg0: i32) -> (i32, i32) {
    %c0_i32 = arith.constant 0 : i32
    %c0_i32_0 = arith.constant 0 : i32
    return %arg0, %c0_i32 : i32, i32
  }
}

</mosaic_0001>

<llo_original>
// kernel: tpu_custom_call.1
$region0: #{tpu_custom_call.1}
  #allocation0 [shape = 'u32[]', space=smem, size = 0x4, offset = 0x4, fixed_abs, tag = 'smem constant byte address 0x4 - core index']
  #allocation1 [shape = 'u32[144,128]{1,0:T(1,128)}', space=vmem, size = 0x12000, scoped, tag = 'internal scratch']
  %s0 = inlined_call_operand.vmem [shape: f32[96,5], index: 0, kind: input, shape index: {}]
  %s1 = inlined_call_operand.vmem [shape: f32[3,33], index: 1, kind: input, shape index: {}]
  %s2 = inlined_call_operand.vmem [shape: f32[33,8], index: 2, kind: input, shape index: {}]
  %s3 = inlined_call_operand.vmem [shape: f32[96,16], index: 3, kind: input, shape index: {}]
  %s4 = inlined_call_operand.vmem [shape: f32[96,16], index: 4, kind: output, shape index: {}]
  %s5 = sld [smem:[#allocation0]]
  $region49: #{tpu_custom_call.1} parent=0
    _
  %s7 = ssub.s32 1, %s5
  %s8 = scalar_select 0, %s7, %s5
  loop: start=0, step=1, limit=5
  $region2: #{tpu_custom_call.1} parent=0 // loop_pre_header
    _
  $region3: #{tpu_custom_call.1} parent=0 // loop_header
    %s10 = sphi 0, %s14
    %p11 = scmp.ge.s32.totalorder %s10, 5
    %s20 = sphi 0, %s22
    %s23 = sphi 0, %s20
    %s24 = sphi 0, %s23
    %s40 = sphi 0, %s24
    %s44 = sphi 0, %s44
    %s46 = sphi 0, %s44
    %s47 = sphi 0, %s46
    %s61 = sphi 0, %s47
    %s65 = sphi 0, %s65
    %s67 = sphi 0, %s65
    %s68 = sphi 0, %s67
    %s82 = sphi 0, %s68
    %s88 = sphi 0, %s90
    %s91 = sphi 0, %s88
    %s92 = sphi 0, %s91
    %s108 = sphi 0, %s92
    %s114 = sphi 0, %s116
    %s117 = sphi 0, %s114
    %s118 = sphi 0, %s117
    %s134 = sphi 0, %s118
  $region4: #{tpu_custom_call.1} parent=0 // loop_header_branch
    %13 = sbr.rel (%p11) target = $region8
  $region5: #{tpu_custom_call.1} parent=0 // loop_body
    %s15 = ssub.s32 %s10, 1
    %s16 = ssub.s32 %s10, 2
    %s17 = sadd.s32 %s10, 1
    %s18 = ssub.s32 %s10, %s17
    %p19 = scmp.eq.s32.totalorder %s18, 0
    %s21 = sadd.s32 %s20, 1
    %s22 = scalar_select %p19, %s20, %s21
    %p25 = pneg %p19
    %p26 = scmp.eq.s32.totalorder %s10, 2
    %p27 = por %p25, %p26
    %p28 = scmp.ne.s32.totalorder %s20, %s23
    %p29 = scmp.eq.s32.totalorder %s10, 0
    %p30 = por %p28, %p29
    %p31 = scmp.ne.s32.totalorder %s20, %s23
    %p32 = scmp.eq.s32.totalorder %s15, 2
    %p33 = por %p31, %p32
    %p34 = scmp.ne.s32.totalorder %s23, %s24
    %p35 = scmp.eq.s32.totalorder %s15, 0
    %p36 = por %p34, %p35
    %p37 = scmp.ne.s32.totalorder %s23, %s24
    %p38 = scmp.eq.s32.totalorder %s16, 2
    %p39 = por %p37, %p38
    %p41 = scmp.ne.s32.totalorder %s24, %s40
    %p42 = scmp.eq.s32.totalorder %s16, 0
    %p43 = por %p41, %p42
    %s45 = sadd.s32 %s44, 1
    %p48 = scmp.eq.s32.totalorder %s10, 2
    %p49 = scmp.ne.s32.totalorder %s44, %s46
    %p50 = scmp.eq.s32.totalorder %s10, 0
    %p51 = por %p49, %p50
    %p52 = scmp.ne.s32.totalorder %s44, %s46
    %p53 = scmp.eq.s32.totalorder %s15, 2
    %p54 = por %p52, %p53
    %p55 = scmp.ne.s32.totalorder %s46, %s47
    %p56 = scmp.eq.s32.totalorder %s15, 0
    %p57 = por %p55, %p56
    %p58 = scmp.ne.s32.totalorder %s46, %s47
    %p59 = scmp.eq.s32.totalorder %s16, 2
    %p60 = por %p58, %p59
    %p62 = scmp.ne.s32.totalorder %s47, %s61
    %p63 = scmp.eq.s32.totalorder %s16, 0
    %p64 = por %p62, %p63
    %s66 = sadd.s32 %s65, 1
    %p69 = scmp.eq.s32.totalorder %s10, 2
    %p70 = scmp.ne.s32.totalorder %s65, %s67
    %p71 = scmp.eq.s32.totalorder %s10, 0
    %p72 = por %p70, %p71
    %p73 = scmp.ne.s32.totalorder %s65, %s67
    %p74 = scmp.eq.s32.totalorder %s15, 2
    %p75 = por %p73, %p74
    %p76 = scmp.ne.s32.totalorder %s67, %s68
    %p77 = scmp.eq.s32.totalorder %s15, 0
    %p78 = por %p76, %p77
    %p79 = scmp.ne.s32.totalorder %s67, %s68
    %p80 = scmp.eq.s32.totalorder %s16, 2
    %p81 = por %p79, %p80
    %p83 = scmp.ne.s32.totalorder %s68, %s82
    %p84 = scmp.eq.s32.totalorder %s16, 0
    %p85 = por %p83, %p84
    %s86 = ssub.s32 %s10, %s17
    %p87 = scmp.eq.s32.totalorder %s86, 0
    %s89 = sadd.s32 %s88, 1
    %s90 = scalar_select %p87, %s88, %s89
    %p93 = pneg %p87
    %p94 = scmp.eq.s32.totalorder %s10, 2
    %p95 = por %p93, %p94
    %p96 = scmp.ne.s32.totalorder %s88, %s91
    %p97 = scmp.eq.s32.totalorder %s10, 0
    %p98 = por %p96, %p97
    %p99 = scmp.ne.s32.totalorder %s88, %s91
    %p100 = scmp.eq.s32.totalorder %s15, 2
    %p101 = por %p99, %p100
    %p102 = scmp.ne.s32.totalorder %s91, %s92
    %p103 = scmp.eq.s32.totalorder %s15, 0
    %p104 = por %p102, %p103
    %p105 = scmp.ne.s32.totalorder %s91, %s92
    %p106 = scmp.eq.s32.totalorder %s16, 2
    %p107 = por %p105, %p106
    %p109 = scmp.ne.s32.totalorder %s92, %s108
    %p110 = scmp.eq.s32.totalorder %s16, 0
    %p111 = por %p109, %p110
    %s112 = ssub.s32 %s10, %s17
    %p113 = scmp.eq.s32.totalorder %s112, 0
    %s115 = sadd.s32 %s114, 1
    %s116 = scalar_select %p113, %s114, %s115
    %p119 = pneg %p113
    %p120 = scmp.eq.s32.totalorder %s10, 2
    %p121 = por %p119, %p120
    %p122 = scmp.ne.s32.totalorder %s114, %s117
    %p123 = scmp.eq.s32.totalorder %s10, 0
    %p124 = por %p122, %p123
    %p125 = scmp.ne.s32.totalorder %s114, %s117
    %p126 = scmp.eq.s32.totalorder %s15, 2
    %p127 = por %p125, %p126
    %p128 = scmp.ne.s32.totalorder %s117, %s118
    %p129 = scmp.eq.s32.totalorder %s15, 0
    %p130 = por %p128, %p129
    %p131 = scmp.ne.s32.totalorder %s117, %s118
    %p132 = scmp.eq.s32.totalorder %s16, 2
    %p133 = por %p131, %p132
    %p135 = scmp.ne.s32.totalorder %s118, %s134
    %p136 = scmp.eq.s32.totalorder %s16, 0
    %p137 = por %p135, %p136
    %p138 = scmp.le.s32.totalorder 1, %s10
    %p139 = scmp.lt.s32.totalorder %s10, 4
    %p140 = pnand %p138, %p139
    %p141 = pneg %p140
    // Predicated region
    $region9: #{tpu_custom_call.1} parent=5 // pred_check
      _
    $region10: #{tpu_custom_call.1} parent=5 // pred_check_branch
      %143 = sbr.rel (%p140) target = $region12
    $region11: #{tpu_custom_call.1} parent=5 // pred_region
      %s144 = ssub.s32 %s10, 1
      // Predicated region
      $region13: #{tpu_custom_call.1} parent=11 // pred_check
        %p145 = pneg %p57
      $region14: #{tpu_custom_call.1} parent=11 // pred_check_branch
        %147 = sbr.rel (%p145) target = $region16
      $region15: #{tpu_custom_call.1} parent=11 // pred_region
        _
      $region16: #{tpu_custom_call.1} parent=11 // pred_fallthru
        _
      // Predicated region
      $region17: #{tpu_custom_call.1} parent=11 // pred_check
        %p148 = pneg %p78
      $region18: #{tpu_custom_call.1} parent=11 // pred_check_branch
        %150 = sbr.rel (%p148) target = $region20
      $region19: #{tpu_custom_call.1} parent=11 // pred_region
        _
      $region20: #{tpu_custom_call.1} parent=11 // pred_fallthru
        _
    $region12: #{tpu_custom_call.1} parent=5 // pred_fallthru
      _
    %p151 = scmp.lt.s32.totalorder %s10, 3
    // Predicated region
    $region21: #{tpu_custom_call.1} parent=5 // pred_check
      %p152 = pneg %p151
    $region22: #{tpu_custom_call.1} parent=5 // pred_check_branch
      %154 = sbr.rel (%p152) target = $region24
    $region23: #{tpu_custom_call.1} parent=5 // pred_region
      // Predicated region
      $region25: #{tpu_custom_call.1} parent=23 // pred_check
        %p155 = pneg %p30
      $region26: #{tpu_custom_call.1} parent=23 // pred_check_branch
        %157 = sbr.rel (%p155) target = $region28
      $region27: #{tpu_custom_call.1} parent=23 // pred_region
        %s158 = smul.u32 4, %s10
        %p159 = scmp.lt.s32.totalorder %s158, 11
        %s160 = scalar_select %p159, %s158, 11
        %s161 = smul.addr %s160, 8
        %s162 = scalar_lea.vmem %s0, %s161
        %s163 = smul.u32 4, %s10
      $region28: #{tpu_custom_call.1} parent=23 // pred_fallthru
        _
      // Predicated region
      $region29: #{tpu_custom_call.1} parent=23 // pred_check
        %p164 = pneg %p98
      $region30: #{tpu_custom_call.1} parent=23 // pred_check_branch
        %166 = sbr.rel (%p164) target = $region32
      $region31: #{tpu_custom_call.1} parent=23 // pred_region
        %s167 = smul.u32 4, %s10
        %p168 = scmp.lt.s32.totalorder %s167, 11
        %s169 = scalar_select %p168, %s167, 11
        %s170 = smul.addr %s169, 8
        %s171 = scalar_lea.vmem %s3, %s170
        %s172 = smul.u32 4, %s10
      $region32: #{tpu_custom_call.1} parent=23 // pred_fallthru
        _
    $region24: #{tpu_custom_call.1} parent=5 // pred_fallthru
      _
    %p173 = scmp.le.s32.totalorder 1, %s10
    %p174 = scmp.lt.s32.totalorder %s10, 4
    %p175 = pnand %p173, %p174
    %p176 = pneg %p175
    // Predicated region
    $region33: #{tpu_custom_call.1} parent=5 // pred_check
      _
    $region34: #{tpu_custom_call.1} parent=5 // pred_check_branch
      %178 = sbr.rel (%p175) target = $region36
    $region35: #{tpu_custom_call.1} parent=5 // pred_region
      %s179 = ssub.s32 %s10, 1
      %s180 = smul.u32 4, %s15
      %p181 = scmp.lt.s32.totalorder %s180, 11
      %s182 = scalar_select %p181, %s180, 11
      %s183 = smul.addr %s182, 8
      %s184 = scalar_lea.vmem %s0, %s183
      %p185 = pneg %p36
      %p186 = pneg %p33
      %p187 = pneg %p57
      %p188 = pneg %p54
      %p189 = pneg %p78
      %p190 = pneg %p75
      %s191 = smul.u32 4, %s15
      %p192 = scmp.lt.s32.totalorder %s191, 11
      %s193 = scalar_select %p192, %s191, 11
      %s194 = smul.addr %s193, 8
      %s195 = scalar_lea.vmem %s3, %s194
      %p196 = pneg %p104
      %p197 = pneg %p101
      %p198 = pneg %p130
      %p199 = pneg %p127
      %s200 = smul.u32 4, %s15
      %p201 = scmp.lt.s32.totalorder %s200, 11
      %s202 = scalar_select %p201, %s200, 11
      %s203 = smul.addr %s202, 8
      %s204 = scalar_lea.vmem %s4, %s203
      %s205 = smul.u32 4, %s15
      %p206 = scmp.lt.s32.totalorder %s205, 11
      %s207 = scalar_select %p206, %s205, 11
      %s208 = smul.addr %s207, 8
      %s209 = scalar_lea.vmem %s0, %s208
      %s210 = smul.u32 4, %s15
      %s211 = smul.u32 4, %s15
      %p212 = scmp.lt.s32.totalorder %s211, 11
      %s213 = scalar_select %p212, %s211, 11
      %s214 = smul.addr %s213, 8
      %s215 = scalar_lea.vmem %s3, %s214
      %s216 = smul.u32 4, %s15
      %s217 = smul.u32 4, %s15
      %p218 = scmp.lt.s32.totalorder %s217, 11
      %s219 = scalar_select %p218, %s217, 11
      %s220 = smul.addr %s219, 8
      %s221 = scalar_lea.vmem %s4, %s220
      %s222 = smul.u32 4, %s15
      %v223 = vld [vmem:[%s209] sm:$0xff]
      %v224 = vld [vmem:[%s209 + $0x8] sm:$0xff]
      %v225 = vld [vmem:[%s209 + $0x10] sm:$0xff]
      %v226 = vld [vmem:[%s209 + $0x18] sm:$0xff]
      %231 = vrot.lane.b32.xlu0 %v223, 3
      %v232 = vpop.permute.xlu0 %231
      %233 = vrot.lane.b32.xlu0 %v224, 3
      %v234 = vpop.permute.xlu0 %233
      %235 = vrot.lane.b32.xlu0 %v225, 3
      %v236 = vpop.permute.xlu0 %235
      %237 = vrot.lane.b32.xlu0 %v226, 3
      %v238 = vpop.permute.xlu0 %237
      %v243 = vsub.f32 %v223, %v232
      %v244 = vsub.f32 %v224, %v234
      %v245 = vsub.f32 %v225, %v236
      %v246 = vsub.f32 %v226, %v238
      %v247 = vld [vmem:[%s1] sm:$0x7]
      %vm248 = vcmask 23552
      %v249 = vsel %vm248, %v223, 0
      %v251 = vsel %vm248, %v224, 0
      %v253 = vsel %vm248, %v225, 0
      %v255 = vsel %vm248, %v226, 0
      %vm257 = vcmask 1042432
      %v259 = vsel %vm257, %v247, 0
      %261 = vmatprep.subr.mxu0 0.0
      %262 = vmatpush1.msra.mxu0 %v259
      %263 = vmatprep.subr.mxu0 0.0
      %264 = vmatpush1.msra.mxu0 0.0
      %265 = vmatprep.subr.mxu0 0.0
      %266 = vmatpush1.msra.mxu0 0.0
      %267 = vmatprep.subr.mxu0 0.0
      %268 = vmatpush1.msra.mxu0 0.0
      %269 = vmatprep.subr.mxu0 0.0
      %270 = vmatpush1.msra.mxu0 0.0
      %271 = vmatprep.subr.mxu0 0.0
      %272 = vmatpush1.msra.mxu0 0.0
      %273 = vmatprep.subr.mxu0 0.0
      %274 = vmatpush1.msra.mxu0 0.0
      %275 = vmatprep.subr.mxu0 0.0
      %276 = vmatpush1.msra.mxu0 0.0
      %277 = vmatprep.subr.mxu0 0.0
      %278 = vmatpush1.msra.mxu0 0.0
      %279 = vmatprep.subr.mxu0 0.0
      %280 = vmatpush1.msra.mxu0 0.0
      %281 = vmatprep.subr.mxu0 0.0
      %282 = vmatpush1.msra.mxu0 0.0
      %283 = vmatprep.subr.mxu0 0.0
      %284 = vmatpush1.msra.mxu0 0.0
      %285 = vmatprep.subr.mxu0 0.0
      %286 = vmatpush1.msra.mxu0 0.0
      %287 = vmatprep.subr.mxu0 0.0
      %288 = vmatpush1.msra.mxu0 0.0
      %289 = vmatprep.subr.mxu0 0.0
      %290 = vmatpush1.msra.mxu0 0.0
      %291 = vmatprep.subr.mxu0 0.0
      %292 = vmatpush1.msra.mxu0 0.0
      %293 = vmatprep.subr.mxu0 0.0
      %294 = vmatpush1.msra.mxu0 0.0
      %295 = vmatprep.subr.mxu0 0.0
      %296 = vmatpush1.msra.mxu0 0.0
      %297 = vmatprep.subr.mxu0 0.0
      %298 = vmatpush1.msra.mxu0 0.0
      %299 = vmatprep.subr.mxu0 0.0
      %300 = vmatpush1.msra.mxu0 0.0
      %301 = vmatprep.subr.mxu0 0.0
      %302 = vmatpush1.msra.mxu0 0.0
      %303 = vmatprep.subr.mxu0 0.0
      %304 = vmatpush1.msra.mxu0 0.0
      %305 = vmatprep.subr.mxu0 0.0
      %306 = vmatpush1.msra.mxu0 0.0
      %307 = vmatprep.subr.mxu0 0.0
      %308 = vmatpush1.msra.mxu0 0.0
      %309 = vmatprep.subr.mxu0 0.0
      %310 = vmatpush1.msra.mxu0 0.0
      %311 = vmatprep.subr.mxu0 0.0
      %312 = vmatpush1.msra.mxu0 0.0
      %313 = vmatprep.subr.mxu0 0.0
      %314 = vmatpush1.msra.mxu0 0.0
      %315 = vmatprep.subr.mxu0 0.0
      %316 = vmatpush1.msra.mxu0 0.0
      %317 = vmatprep.subr.mxu0 0.0
      %318 = vmatpush1.msra.mxu0 0.0
      %319 = vmatprep.subr.mxu0 0.0
      %320 = vmatpush1.msra.mxu0 0.0
      %321 = vmatprep.subr.mxu0 0.0
      %322 = vmatpush1.msra.mxu0 0.0
      %323 = vmatprep.subr.mxu0 0.0
      %324 = vmatpush1.msra.mxu0 0.0
      %325 = vmatprep.mubr.f32.mxu0 0.0
      %326 = vmatmul.mubr.f32.gmra.mrb[0].mxu0 %v249
      %v327 = vpop.f32.mrb[0].mxu0
      %v328 = vadd.f32 0.0, %v327
      %v329 = vpop.f32.mrb[0].mxu0
      %330 = vmatprep.mubr.f32.mxu0 0.0
      %331 = vmatmul.mubr.f32.gmra.mrb[0].mxu0 %v251
      %v332 = vpop.f32.mrb[0].mxu0
      %v333 = vadd.f32 0.0, %v332
      %v334 = vpop.f32.mrb[0].mxu0
      %335 = vmatprep.mubr.f32.mxu0 0.0
      %336 = vmatmul.mubr.f32.gmra.mrb[0].mxu0 %v253
      %v337 = vpop.f32.mrb[0].mxu0
      %v338 = vadd.f32 0.0, %v337
      %v339 = vpop.f32.mrb[0].mxu0
      %340 = vmatprep.mubr.f32.mxu0 0.0
      %341 = vmatmul.mubr.f32.gmra.mrb[0].mxu0 %v255
      %v342 = vpop.f32.mrb[0].mxu0
      %v343 = vadd.f32 0.0, %v342
      %v344 = vpop.f32.mrb[0].mxu0
      %345 = vdwg.mxu0
      %v346 = vmax.f32 %v328, 0.0
      %v347 = vmax.f32 %v333, 0.0
      %v348 = vmax.f32 %v338, 0.0
      %v349 = vmax.f32 %v343, 0.0
      %v350 = vld [vmem:[%s2] sm:$0xff]
      %v351 = vld [vmem:[%s2 + $0x8] sm:$0xff]
      %v352 = vld [vmem:[%s2 + $0x10] sm:$0xff]
      %v353 = vld [vmem:[%s2 + $0x18] sm:$0xff]
      %v354 = vld [vmem:[%s2 + $0x20] sm:$0x1]
      %vm355 = vcmask 269312
      %v357 = vsel %vm355, %v346, 0
      %v360 = vsel %vm355, %v347, 0
      %v363 = vsel %vm355, %v348, 0
      %v366 = vsel %vm355, %v349, 0
      %vm368 = vcmask 1040384
      %v370 = vsel %vm368, %v354, 0
      %372 = vmatprep.subr.mxu0 0.0
      %373 = vmatpush1.msra.mxu0 %v350
      %374 = vmatprep.subr.mxu0 0.0
      %375 = vmatpush1.msra.mxu0 %v351
      %376 = vmatprep.subr.mxu0 0.0
      %377 = vmatpush1.msra.mxu0 %v352
      %378 = vmatprep.subr.mxu0 0.0
      %379 = vmatpush1.msra.mxu0 %v353
      %380 = vmatprep.subr.mxu0 0.0
      %381 = vmatpush1.msra.mxu0 %v370
      %382 = vmatprep.subr.mxu0 0.0
      %383 = vmatpush1.msra.mxu0 0.0
      %384 = vmatprep.subr.mxu0 0.0
      %385 = vmatpush1.msra.mxu0 0.0
      %386 = vmatprep.subr.mxu0 0.0
      %387 = vmatpush1.msra.mxu0 0.0
      %388 = vmatprep.subr.mxu0 0.0
      %389 = vmatpush1.msra.mxu0 0.0
      %390 = vmatprep.subr.mxu0 0.0
      %391 = vmatpush1.msra.mxu0 0.0
      %392 = vmatprep.subr.mxu0 0.0
      %393 = vmatpush1.msra.mxu0 0.0
      %394 = vmatprep.subr.mxu0 0.0
      %395 = vmatpush1.msra.mxu0 0.0
      %396 = vmatprep.subr.mxu0 0.0
      %397 = vmatpush1.msra.mxu0 0.0
      %398 = vmatprep.subr.mxu0 0.0
      %399 = vmatpush1.msra.mxu0 0.0
      %400 = vmatprep.subr.mxu0 0.0
      %401 = vmatpush1.msra.mxu0 0.0
      %402 = vmatprep.subr.mxu0 0.0
      %403 = vmatpush1.msra.mxu0 0.0
      %404 = vmatprep.subr.mxu0 0.0
      %405 = vmatpush1.msra.mxu0 0.0
      %406 = vmatprep.subr.mxu0 0.0
      %407 = vmatpush1.msra.mxu0 0.0
      %408 = vmatprep.subr.mxu0 0.0
      %409 = vmatpush1.msra.mxu0 0.0
      %410 = vmatprep.subr.mxu0 0.0
      %411 = vmatpush1.msra.mxu0 0.0
      %412 = vmatprep.subr.mxu0 0.0
      %413 = vmatpush1.msra.mxu0 0.0
      %414 = vmatprep.subr.mxu0 0.0
      %415 = vmatpush1.msra.mxu0 0.0
      %416 = vmatprep.subr.mxu0 0.0
      %417 = vmatpush1.msra.mxu0 0.0
      %418 = vmatprep.subr.mxu0 0.0
      %419 = vmatpush1.msra.mxu0 0.0
      %420 = vmatprep.subr.mxu0 0.0
      %421 = vmatpush1.msra.mxu0 0.0
      %422 = vmatprep.subr.mxu0 0.0
      %423 = vmatpush1.msra.mxu0 0.0
      %424 = vmatprep.subr.mxu0 0.0
      %425 = vmatpush1.msra.mxu0 0.0
      %426 = vmatprep.subr.mxu0 0.0
      %427 = vmatpush1.msra.mxu0 0.0
      %428 = vmatprep.subr.mxu0 0.0
      %429 = vmatpush1.msra.mxu0 0.0
      %430 = vmatprep.subr.mxu0 0.0
      %431 = vmatpush1.msra.mxu0 0.0
      %432 = vmatprep.subr.mxu0 0.0
      %433 = vmatpush1.msra.mxu0 0.0
      %434 = vmatprep.subr.mxu0 0.0
      %435 = vmatpush1.msra.mxu0 0.0
      %436 = vmatprep.mubr.f32.mxu0 0.0
      %437 = vmatmul.mubr.f32.gmra.mrb[0].mxu0 %v357
      %v438 = vpop.f32.mrb[0].mxu0
      %v439 = vadd.f32 0.0, %v438
      %v440 = vpop.f32.mrb[0].mxu0
      %441 = vmatprep.mubr.f32.mxu0 0.0
      %442 = vmatmul.mubr.f32.gmra.mrb[0].mxu0 %v360
      %v443 = vpop.f32.mrb[0].mxu0
      %v444 = vadd.f32 0.0, %v443
      %v445 = vpop.f32.mrb[0].mxu0
      %446 = vmatprep.mubr.f32.mxu0 0.0
      %447 = vmatmul.mubr.f32.gmra.mrb[0].mxu0 %v363
      %v448 = vpop.f32.mrb[0].mxu0
      %v449 = vadd.f32 0.0, %v448
      %v450 = vpop.f32.mrb[0].mxu0
      %451 = vmatprep.mubr.f32.mxu0 0.0
      %452 = vmatmul.mubr.f32.gmra.mrb[0].mxu0 %v366
      %v453 = vpop.f32.mrb[0].mxu0
      %v454 = vadd.f32 0.0, %v453
      %v455 = vpop.f32.mrb[0].mxu0
      %456 = vdwg.mxu0
      %v457 = vmul.f32 %v243, 0.5
      %v458 = vmul.f32 %v244, 0.5
      %v459 = vmul.f32 %v245, 0.5
      %v460 = vmul.f32 %v246, 0.5
      %465 = vrot.lane.b32.xlu0 %v439, 122
      %v466 = vpop.permute.xlu0 %465
      %467 = vrot.lane.b32.xlu0 %v444, 122
      %v468 = vpop.permute.xlu0 %467
      %469 = vrot.lane.b32.xlu0 %v449, 122
      %v470 = vpop.permute.xlu0 %469
      %471 = vrot.lane.b32.xlu0 %v454, 122
      %v472 = vpop.permute.xlu0 %471
      %v477 = vadd.f32 %v439, %v466
      %v478 = vadd.f32 %v444, %v468
      %v479 = vadd.f32 %v449, %v470
      %v480 = vadd.f32 %v454, %v472
      %485 = vrot.lane.b32.xlu0 %v477, 3
      %v486 = vpop.permute.xlu0 %485
      %487 = vrot.lane.b32.xlu0 %v478, 3
      %v488 = vpop.permute.xlu0 %487
      %489 = vrot.lane.b32.xlu0 %v479, 3
      %v490 = vpop.permute.xlu0 %489
      %491 = vrot.lane.b32.xlu0 %v480, 3
      %v492 = vpop.permute.xlu0 %491
      %v497 = vmul.f32 %v457, %v486
      %v498 = vmul.f32 %v458, %v488
      %v499 = vmul.f32 %v459, %v490
      %v500 = vmul.f32 %v460, %v492
      %v501 = vsub.f32 %v439, %v466
      %v502 = vsub.f32 %v444, %v468
      %v503 = vsub.f32 %v449, %v470
      %v504 = vsub.f32 %v454, %v472
      %509 = vrot.lane.b32.xlu0 %v501, 3
      %v510 = vpop.permute.xlu0 %509
      %511 = vrot.lane.b32.xlu0 %v502, 3
      %v512 = vpop.permute.xlu0 %511
      %513 = vrot.lane.b32.xlu0 %v503, 3
      %v514 = vpop.permute.xlu0 %513
      %515 = vrot.lane.b32.xlu0 %v504, 3
      %v516 = vpop.permute.xlu0 %515
      %v521 = vmul.f32 %v457, %v510
      %v522 = vmul.f32 %v458, %v512
      %v523 = vmul.f32 %v459, %v514
      %v524 = vmul.f32 %v460, %v516
      %525 = vrot.lane.b32.xlu0 %v439, 1
      %v526 = vpop.permute.xlu0 %525
      %527 = vrot.lane.b32.xlu0 %v444, 1
      %v528 = vpop.permute.xlu0 %527
      %529 = vrot.lane.b32.xlu0 %v449, 1
      %v530 = vpop.permute.xlu0 %529
      %531 = vrot.lane.b32.xlu0 %v454, 1
      %v532 = vpop.permute.xlu0 %531
      %v537 = vmul.f32 %v243, %v526
      %v538 = vmul.f32 %v244, %v528
      %v539 = vmul.f32 %v245, %v530
      %v540 = vmul.f32 %v246, %v532
      %541 = vrot.lane.b32.xlu0 %v439, 127
      %v542 = vpop.permute.xlu0 %541
      %543 = vrot.lane.b32.xlu0 %v444, 127
      %v544 = vpop.permute.xlu0 %543
      %545 = vrot.lane.b32.xlu0 %v449, 127
      %v546 = vpop.permute.xlu0 %545
      %547 = vrot.lane.b32.xlu0 %v454, 127
      %v548 = vpop.permute.xlu0 %547
      %v553 = vmul.f32 %v243, %v542
      %v554 = vmul.f32 %v244, %v544
      %v555 = vmul.f32 %v245, %v546
      %v556 = vmul.f32 %v246, %v548
      %v557 = vmul.f32 %v521, %v521
      %v558 = vmul.f32 %v522, %v522
      %v559 = vmul.f32 %v523, %v523
      %v560 = vmul.f32 %v524, %v524
      %v561 = vmul.f32 %v537, %v553
      %v562 = vmul.f32 %v538, %v554
      %v563 = vmul.f32 %v539, %v555
      %v564 = vmul.f32 %v540, %v556
      %v565 = vadd.f32 %v557, %v561
      %v566 = vadd.f32 %v558, %v562
      %v567 = vadd.f32 %v559, %v563
      %v568 = vadd.f32 %v560, %v564
      %v569 = vmul.f32 %v565, 0.0009765625
      %v570 = vmul.f32 %v566, 0.0009765625
      %v571 = vmul.f32 %v567, 0.0009765625
      %v572 = vmul.f32 %v568, 0.0009765625
      %v573 = vmul.f32 %v569, 2.4801588e-05
      %v574 = vmul.f32 %v570, 2.4801588e-05
      %v575 = vmul.f32 %v571, 2.4801588e-05
      %v576 = vmul.f32 %v572, 2.4801588e-05
      %v577 = vadd.f32 %v573, 0.0013888889
      %v578 = vadd.f32 %v574, 0.0013888889
      %v579 = vadd.f32 %v575, 0.0013888889
      %v580 = vadd.f32 %v576, 0.0013888889
      %v581 = vmul.f32 %v569, %v577
      %v582 = vmul.f32 %v570, %v578
      %v583 = vmul.f32 %v571, %v579
      %v584 = vmul.f32 %v572, %v580
      %v585 = vadd.f32 %v581, 0.041666668
      %v586 = vadd.f32 %v582, 0.041666668
      %v587 = vadd.f32 %v583, 0.041666668
      %v588 = vadd.f32 %v584, 0.041666668
      %v589 = vmul.f32 %v569, %v585
      %v590 = vmul.f32 %v570, %v586
      %v591 = vmul.f32 %v571, %v587
      %v592 = vmul.f32 %v572, %v588
      %v593 = vadd.f32 %v589, 0.5
      %v594 = vadd.f32 %v590, 0.5
      %v595 = vadd.f32 %v591, 0.5
      %v596 = vadd.f32 %v592, 0.5
      %v597 = vmul.f32 %v569, %v593
      %v598 = vmul.f32 %v570, %v594
      %v599 = vmul.f32 %v571, %v595
      %v600 = vmul.f32 %v572, %v596
      %v601 = vmul.f32 %v569, 2.7557319e-06
      %v602 = vmul.f32 %v570, 2.7557319e-06
      %v603 = vmul.f32 %v571, 2.7557319e-06
      %v604 = vmul.f32 %v572, 2.7557319e-06
      %v605 = vadd.f32 %v601, 0.0001984127
      %v606 = vadd.f32 %v602, 0.0001984127
      %v607 = vadd.f32 %v603, 0.0001984127
      %v608 = vadd.f32 %v604, 0.0001984127
      %v609 = vmul.f32 %v569, %v605
      %v610 = vmul.f32 %v570, %v606
      %v611 = vmul.f32 %v571, %v607
      %v612 = vmul.f32 %v572, %v608
      %v613 = vadd.f32 %v609, 0.008333334
      %v614 = vadd.f32 %v610, 0.008333334
      %v615 = vadd.f32 %v611, 0.008333334
      %v616 = vadd.f32 %v612, 0.008333334
      %v617 = vmul.f32 %v569, %v613
      %v618 = vmul.f32 %v570, %v614
      %v619 = vmul.f32 %v571, %v615
      %v620 = vmul.f32 %v572, %v616
      %v621 = vadd.f32 %v617, 0.16666667
      %v622 = vadd.f32 %v618, 0.16666667
      %v623 = vadd.f32 %v619, 0.16666667
      %v624 = vadd.f32 %v620, 0.16666667
      %v625 = vmul.f32 %v569, %v621
      %v626 = vmul.f32 %v570, %v622
      %v627 = vmul.f32 %v571, %v623
      %v628 = vmul.f32 %v572, %v624
      %v629 = vadd.f32 %v625, 1.0
      %v630 = vadd.f32 %v626, 1.0
      %v631 = vadd.f32 %v627, 1.0
      %v632 = vadd.f32 %v628, 1.0
      %v633 = vadd.f32 %v597, 1.0
      %v634 = vadd.f32 %v598, 1.0
      %v635 = vadd.f32 %v599, 1.0
      %v636 = vadd.f32 %v600, 1.0
      %v637 = vmul.f32 %v629, %v633
      %v638 = vmul.f32 %v630, %v634
      %v639 = vmul.f32 %v631, %v635
      %v640 = vmul.f32 %v632, %v636
      %v641 = vmul.f32 %v597, 2.0
      %v642 = vmul.f32 %v598, 2.0
      %v643 = vmul.f32 %v599, 2.0
      %v644 = vmul.f32 %v600, 2.0
      %v645 = vadd.f32 %v641, 4.0
      %v646 = vadd.f32 %v642, 4.0
      %v647 = vadd.f32 %v643, 4.0
      %v648 = vadd.f32 %v644, 4.0
      %v649 = vmul.f32 %v597, %v645
      %v650 = vmul.f32 %v598, %v646
      %v651 = vmul.f32 %v599, %v647
      %v652 = vmul.f32 %v600, %v648
      %v653 = vadd.f32 %v649, 1.0
      %v654 = vadd.f32 %v650, 1.0
      %v655 = vadd.f32 %v651, 1.0
      %v656 = vadd.f32 %v652, 1.0
      %v657 = vmul.f32 %v637, %v653
      %v658 = vmul.f32 %v638, %v654
      %v659 = vmul.f32 %v639, %v655
      %v660 = vmul.f32 %v640, %v656
      %v661 = vmul.f32 %v649, 2.0
      %v662 = vmul.f32 %v650, 2.0
      %v663 = vmul.f32 %v651, 2.0
      %v664 = vmul.f32 %v652, 2.0
      %v665 = vadd.f32 %v661, 4.0
      %v666 = vadd.f32 %v662, 4.0
      %v667 = vadd.f32 %v663, 4.0
      %v668 = vadd.f32 %v664, 4.0
      %v669 = vmul.f32 %v649, %v665
      %v670 = vmul.f32 %v650, %v666
      %v671 = vmul.f32 %v651, %v667
      %v672 = vmul.f32 %v652, %v668
      %v673 = vadd.f32 %v669, 1.0
      %v674 = vadd.f32 %v670, 1.0
      %v675 = vadd.f32 %v671, 1.0
      %v676 = vadd.f32 %v672, 1.0
      %v677 = vmul.f32 %v657, %v673
      %v678 = vmul.f32 %v658, %v674
      %v679 = vmul.f32 %v659, %v675
      %v680 = vmul.f32 %v660, %v676
      %v681 = vmul.f32 %v669, 2.0
      %v682 = vmul.f32 %v670, 2.0
      %v683 = vmul.f32 %v671, 2.0
      %v684 = vmul.f32 %v672, 2.0
      %v685 = vadd.f32 %v681, 4.0
      %v686 = vadd.f32 %v682, 4.0
      %v687 = vadd.f32 %v683, 4.0
      %v688 = vadd.f32 %v684, 4.0
      %v689 = vmul.f32 %v669, %v685
      %v690 = vmul.f32 %v670, %v686
      %v691 = vmul.f32 %v671, %v687
      %v692 = vmul.f32 %v672, %v688
      %v693 = vadd.f32 %v689, 1.0
      %v694 = vadd.f32 %v690, 1.0
      %v695 = vadd.f32 %v691, 1.0
      %v696 = vadd.f32 %v692, 1.0
      %v697 = vmul.f32 %v677, %v693
      %v698 = vmul.f32 %v678, %v694
      %v699 = vmul.f32 %v679, %v695
      %v700 = vmul.f32 %v680, %v696
      %v701 = vmul.f32 %v689, 2.0
      %v702 = vmul.f32 %v690, 2.0
      %v703 = vmul.f32 %v691, 2.0
      %v704 = vmul.f32 %v692, 2.0
      %v705 = vadd.f32 %v701, 4.0
      %v706 = vadd.f32 %v702, 4.0
      %v707 = vadd.f32 %v703, 4.0
      %v708 = vadd.f32 %v704, 4.0
      %v709 = vmul.f32 %v689, %v705
      %v710 = vmul.f32 %v690, %v706
      %v711 = vmul.f32 %v691, %v707
      %v712 = vmul.f32 %v692, %v708
      %v713 = vadd.f32 %v709, 1.0
      %v714 = vadd.f32 %v710, 1.0
      %v715 = vadd.f32 %v711, 1.0
      %v716 = vadd.f32 %v712, 1.0
      %v717 = vmul.f32 %v697, %v713
      %v718 = vmul.f32 %v698, %v714
      %v719 = vmul.f32 %v699, %v715
      %v720 = vmul.f32 %v700, %v716
      %v721 = vmul.f32 %v709, 2.0
      %v722 = vmul.f32 %v710, 2.0
      %v723 = vmul.f32 %v711, 2.0
      %v724 = vmul.f32 %v712, 2.0
      %v725 = vadd.f32 %v721, 4.0
      %v726 = vadd.f32 %v722, 4.0
      %v727 = vadd.f32 %v723, 4.0
      %v728 = vadd.f32 %v724, 4.0
      %v729 = vmul.f32 %v709, %v725
      %v730 = vmul.f32 %v710, %v726
      %v731 = vmul.f32 %v711, %v727
      %v732 = vmul.f32 %v712, %v728
      %v733 = vadd.f32 %v729, 1.0
      %v734 = vadd.f32 %v730, 1.0
      %v735 = vadd.f32 %v731, 1.0
      %v736 = vadd.f32 %v732, 1.0
      %v737 = vmul.f32 %v497, 1.442695
      %v738 = vpow.pop %v737
      %v739 = vmul.f32 %v498, 1.442695
      %v740 = vpow.pop %v739
      %v741 = vmul.f32 %v499, 1.442695
      %v742 = vpow.pop %v741
      %v743 = vmul.f32 %v500, 1.442695
      %v744 = vpow.pop %v743
      %v745 = vmul.f32 %v717, %v521
      %v746 = vmul.f32 %v718, %v522
      %v747 = vmul.f32 %v719, %v523
      %v748 = vmul.f32 %v720, %v524
      %v749 = vadd.f32 %v733, %v745
      %v750 = vadd.f32 %v734, %v746
      %v751 = vadd.f32 %v735, %v747
      %v752 = vadd.f32 %v736, %v748
      %v753 = vmul.f32 %v738, %v749
      %v754 = vmul.f32 %v740, %v750
      %v755 = vmul.f32 %v742, %v751
      %v756 = vmul.f32 %v744, %v752
      %v757 = vmul.f32 %v717, %v537
      %v758 = vmul.f32 %v718, %v538
      %v759 = vmul.f32 %v719, %v539
      %v760 = vmul.f32 %v720, %v540
      %v761 = vmul.f32 %v738, %v757
      %v762 = vmul.f32 %v740, %v758
      %v763 = vmul.f32 %v742, %v759
      %v764 = vmul.f32 %v744, %v760
      %v765 = vmul.f32 %v717, %v553
      %v766 = vmul.f32 %v718, %v554
      %v767 = vmul.f32 %v719, %v555
      %v768 = vmul.f32 %v720, %v556
      %v769 = vmul.f32 %v738, %v765
      %v770 = vmul.f32 %v740, %v766
      %v771 = vmul.f32 %v742, %v767
      %v772 = vmul.f32 %v744, %v768
      %v773 = vsub.f32 %v733, %v745
      %v774 = vsub.f32 %v734, %v746
      %v775 = vsub.f32 %v735, %v747
      %v776 = vsub.f32 %v736, %v748
      %v777 = vmul.f32 %v738, %v773
      %v778 = vmul.f32 %v740, %v774
      %v779 = vmul.f32 %v742, %v775
      %v780 = vmul.f32 %v744, %v776
      %785 = vrot.lane.b32.xlu0 %v753, 1
      %v786 = vpop.permute.xlu0 %785
      %787 = vrot.lane.b32.xlu0 %v754, 1
      %v788 = vpop.permute.xlu0 %787
      %789 = vrot.lane.b32.xlu0 %v755, 1
      %v790 = vpop.permute.xlu0 %789
      %791 = vrot.lane.b32.xlu0 %v756, 1
      %v792 = vpop.permute.xlu0 %791
      %v797 = vmul.f32 %v753, %v786
      %v798 = vmul.f32 %v754, %v788
      %v799 = vmul.f32 %v755, %v790
      %v800 = vmul.f32 %v756, %v792
      %805 = vrot.lane.b32.xlu0 %v769, 1
      %v806 = vpop.permute.xlu0 %805
      %807 = vrot.lane.b32.xlu0 %v770, 1
      %v808 = vpop.permute.xlu0 %807
      %809 = vrot.lane.b32.xlu0 %v771, 1
      %v810 = vpop.permute.xlu0 %809
      %811 = vrot.lane.b32.xlu0 %v772, 1
      %v812 = vpop.permute.xlu0 %811
      %v817 = vmul.f32 %v761, %v806
      %v818 = vmul.f32 %v762, %v808
      %v819 = vmul.f32 %v763, %v810
      %v820 = vmul.f32 %v764, %v812
      %v821 = vadd.f32 %v797, %v817
      %v822 = vadd.f32 %v798, %v818
      %v823 = vadd.f32 %v799, %v819
      %v824 = vadd.f32 %v800, %v820
      %829 = vrot.lane.b32.xlu0 %v761, 1
      %v830 = vpop.permute.xlu0 %829
      %831 = vrot.lane.b32.xlu0 %v762, 1
      %v832 = vpop.permute.xlu0 %831
      %833 = vrot.lane.b32.xlu0 %v763, 1
      %v834 = vpop.permute.xlu0 %833
      %835 = vrot.lane.b32.xlu0 %v764, 1
      %v836 = vpop.permute.xlu0 %835
      %v841 = vmul.f32 %v753, %v830
      %v842 = vmul.f32 %v754, %v832
      %v843 = vmul.f32 %v755, %v834
      %v844 = vmul.f32 %v756, %v836
      %849 = vrot.lane.b32.xlu0 %v777, 1
      %v850 = vpop.permute.xlu0 %849
      %851 = vrot.lane.b32.xlu0 %v778, 1
      %v852 = vpop.permute.xlu0 %851
      %853 = vrot.lane.b32.xlu0 %v779, 1
      %v854 = vpop.permute.xlu0 %853
      %855 = vrot.lane.b32.xlu0 %v780, 1
      %v856 = vpop.permute.xlu0 %855
      %v861 = vmul.f32 %v761, %v850
      %v862 = vmul.f32 %v762, %v852
      %v863 = vmul.f32 %v763, %v854
      %v864 = vmul.f32 %v764, %v856
      %v865 = vadd.f32 %v841, %v861
      %v866 = vadd.f32 %v842, %v862
      %v867 = vadd.f32 %v843, %v863
      %v868 = vadd.f32 %v844, %v864
      %v869 = vmul.f32 %v769, %v786
      %v870 = vmul.f32 %v770, %v788
      %v871 = vmul.f32 %v771, %v790
      %v872 = vmul.f32 %v772, %v792
      %v873 = vmul.f32 %v777, %v806
      %v874 = vmul.f32 %v778, %v808
      %v875 = vmul.f32 %v779, %v810
      %v876 = vmul.f32 %v780, %v812
      %v877 = vadd.f32 %v869, %v873
      %v878 = vadd.f32 %v870, %v874
      %v879 = vadd.f32 %v871, %v875
      %v880 = vadd.f32 %v872, %v876
      %v881 = vmul.f32 %v769, %v830
      %v882 = vmul.f32 %v770, %v832
      %v883 = vmul.f32 %v771, %v834
      %v884 = vmul.f32 %v772, %v836
      %v885 = vmul.f32 %v777, %v850
      %v886 = vmul.f32 %v778, %v852
      %v887 = vmul.f32 %v779, %v854
      %v888 = vmul.f32 %v780, %v856
      %v889 = vadd.f32 %v881, %v885
      %v890 = vadd.f32 %v882, %v886
      %v891 = vadd.f32 %v883, %v887
      %v892 = vadd.f32 %v884, %v888
      %v893 = vld [vmem:[%s215] sm:$0xff]
      %v894 = vld [vmem:[%s215 + $0x8] sm:$0xff]
      %v895 = vld [vmem:[%s215 + $0x10] sm:$0xff]
      %v896 = vld [vmem:[%s215 + $0x18] sm:$0xff]
      %898 = vset.pattern.permute.xlu0 4
      %899 = vperm.xlu0 %898, %v821
      %v900 = vpop.permute.xlu0 %899
      %903 = vset.pattern.permute.xlu0 4
      %904 = vperm.xlu0 %903, %v822
      %v905 = vpop.permute.xlu0 %904
      %908 = vset.pattern.permute.xlu0 4
      %909 = vperm.xlu0 %908, %v823
      %v910 = vpop.permute.xlu0 %909
      %913 = vset.pattern.permute.xlu0 4
      %914 = vperm.xlu0 %913, %v824
      %v915 = vpop.permute.xlu0 %914
      %v917 = vmul.f32 %v900, %v893
      %v918 = vmul.f32 %v905, %v894
      %v919 = vmul.f32 %v910, %v895
      %v920 = vmul.f32 %v915, %v896
      %922 = vset.pattern.permute.xlu0 4
      %923 = vperm.xlu0 %922, %v865
      %v924 = vpop.permute.xlu0 %923
      %927 = vset.pattern.permute.xlu0 4
      %928 = vperm.xlu0 %927, %v866
      %v929 = vpop.permute.xlu0 %928
      %932 = vset.pattern.permute.xlu0 4
      %933 = vperm.xlu0 %932, %v867
      %v934 = vpop.permute.xlu0 %933
      %937 = vset.pattern.permute.xlu0 4
      %938 = vperm.xlu0 %937, %v868
      %v939 = vpop.permute.xlu0 %938
      %v941 = vmul.f32 %v924, %v893
      %v942 = vmul.f32 %v929, %v894
      %v943 = vmul.f32 %v934, %v895
      %v944 = vmul.f32 %v939, %v896
      %949 = vrot.lane.b32.xlu0 %v941, 120
      %v950 = vpop.permute.xlu0 %949
      %951 = vrot.lane.b32.xlu0 %v942, 120
      %v952 = vpop.permute.xlu0 %951
      %953 = vrot.lane.b32.xlu0 %v943, 120
      %v954 = vpop.permute.xlu0 %953
      %955 = vrot.lane.b32.xlu0 %v944, 120
      %v956 = vpop.permute.xlu0 %955
      %v961 = vadd.f32 %v917, %v950
      %v962 = vadd.f32 %v918, %v952
      %v963 = vadd.f32 %v919, %v954
      %v964 = vadd.f32 %v920, %v956
      %vm965 = vcmask 64512
      %966 = vst.msk [vmem:[%s221] sm:$0xff] %vm965, %v961
      %967 = vst.msk [vmem:[%s221 + $0x8] sm:$0xff] %vm965, %v962
      %968 = vst.msk [vmem:[%s221 + $0x10] sm:$0xff] %vm965, %v963
      %969 = vst.msk [vmem:[%s221 + $0x18] sm:$0xff] %vm965, %v964
      %971 = vset.pattern.permute.xlu0 4
      %972 = vperm.xlu0 %971, %v877
      %v973 = vpop.permute.xlu0 %972
      %976 = vset.pattern.permute.xlu0 4
      %977 = vperm.xlu0 %976, %v878
      %v978 = vpop.permute.xlu0 %977
      %981 = vset.pattern.permute.xlu0 4
      %982 = vperm.xlu0 %981, %v879
      %v983 = vpop.permute.xlu0 %982
      %986 = vset.pattern.permute.xlu0 4
      %987 = vperm.xlu0 %986, %v880
      %v988 = vpop.permute.xlu0 %987
      %v990 = vmul.f32 %v973, %v893
      %v991 = vmul.f32 %v978, %v894
      %v992 = vmul.f32 %v983, %v895
      %v993 = vmul.f32 %v988, %v896
      %995 = vset.pattern.permute.xlu0 4
      %996 = vperm.xlu0 %995, %v889
      %v997 = vpop.permute.xlu0 %996
      %1000 = vset.pattern.permute.xlu0 4
      %1001 = vperm.xlu0 %1000, %v890
      %v1002 = vpop.permute.xlu0 %1001
      %1005 = vset.pattern.permute.xlu0 4
      %1006 = vperm.xlu0 %1005, %v891
      %v1007 = vpop.permute.xlu0 %1006
      %1010 = vset.pattern.permute.xlu0 4
      %1011 = vperm.xlu0 %1010, %v892
      %v1012 = vpop.permute.xlu0 %1011
      %v1014 = vmul.f32 %v997, %v893
      %v1015 = vmul.f32 %v1002, %v894
      %v1016 = vmul.f32 %v1007, %v895
      %v1017 = vmul.f32 %v1012, %v896
      %1022 = vrot.lane.b32.xlu0 %v1014, 120
      %v1023 = vpop.permute.xlu0 %1022
      %1024 = vrot.lane.b32.xlu0 %v1015, 120
      %v1025 = vpop.permute.xlu0 %1024
      %1026 = vrot.lane.b32.xlu0 %v1016, 120
      %v1027 = vpop.permute.xlu0 %1026
      %1028 = vrot.lane.b32.xlu0 %v1017, 120
      %v1029 = vpop.permute.xlu0 %1028
      %v1034 = vadd.f32 %v990, %v1023
      %v1035 = vadd.f32 %v991, %v1025
      %v1036 = vadd.f32 %v992, %v1027
      %v1037 = vadd.f32 %v993, %v1029
      %1042 = vrot.lane.b32.xlu0 %v1034, 8
      %v1043 = vpop.permute.xlu0 %1042
      %1044 = vrot.lane.b32.xlu0 %v1035, 8
      %v1045 = vpop.permute.xlu0 %1044
      %1046 = vrot.lane.b32.xlu0 %v1036, 8
      %v1047 = vpop.permute.xlu0 %1046
      %1048 = vrot.lane.b32.xlu0 %v1037, 8
      %v1049 = vpop.permute.xlu0 %1048
      %vm1054 = vcmask 130112
      %1055 = vst.msk [vmem:[%s221] sm:$0xff] %vm1054, %v1043
      %1056 = vst.msk [vmem:[%s221 + $0x8] sm:$0xff] %vm1054, %v1045
      %1057 = vst.msk [vmem:[%s221 + $0x10] sm:$0xff] %vm1054, %v1047
      %1058 = vst.msk [vmem:[%s221 + $0x18] sm:$0xff] %vm1054, %v1049
      %s1059 = smul.u32 4, %s15
      %p1060 = scmp.lt.s32.totalorder %s1059, 11
      %s1061 = scalar_select %p1060, %s1059, 11
      %s1062 = smul.addr %s1061, 8
      %s1063 = scalar_lea.vmem %s4, %s1062
      // Predicated region
      $region37: #{tpu_custom_call.1} parent=35 // pred_check
        %p1064 = pneg %p127
      $region38: #{tpu_custom_call.1} parent=35 // pred_check_branch
        %1066 = sbr.rel (%p1064) target = $region40
      $region39: #{tpu_custom_call.1} parent=35 // pred_region
        %s1067 = smul.u32 4, %s15
      $region40: #{tpu_custom_call.1} parent=35 // pred_fallthru
        _
    $region36: #{tpu_custom_call.1} parent=5 // pred_fallthru
      _
    %p1068 = scmp.le.s32.totalorder 2, %s10
    // Predicated region
    $region41: #{tpu_custom_call.1} parent=5 // pred_check
      %p1069 = pneg %p1068
    $region42: #{tpu_custom_call.1} parent=5 // pred_check_branch
      %1071 = sbr.rel (%p1069) target = $region44
    $region43: #{tpu_custom_call.1} parent=5 // pred_region
      %s1072 = ssub.s32 %s10, 2
      // Predicated region
      $region45: #{tpu_custom_call.1} parent=43 // pred_check
        %p1073 = pneg %p133
      $region46: #{tpu_custom_call.1} parent=43 // pred_check_branch
        %1075 = sbr.rel (%p1073) target = $region48
      $region47: #{tpu_custom_call.1} parent=43 // pred_region
        %s1076 = smul.u32 4, %s16
        %p1077 = scmp.lt.s32.totalorder %s1076, 11
        %s1078 = scalar_select %p1077, %s1076, 11
        %s1079 = smul.addr %s1078, 8
        %s1080 = scalar_lea.vmem %s4, %s1079
      $region48: #{tpu_custom_call.1} parent=43 // pred_fallthru
        _
    $region44: #{tpu_custom_call.1} parent=5 // pred_fallthru
      _
  $region6: #{tpu_custom_call.1} parent=0 // loop_footer
    %s14 = sadd.s32 1, %s10
  $region7: #{tpu_custom_call.1} parent=0 // loop_footer_branch
    %9 = sbr.rel target = $region3
  $region8: #{tpu_custom_call.1} parent=0 // loop_exit
    _

</llo_original>
